<compile_context>
chip_gen: v7x
topology: tpu7x:2x2x1
jax: 0.10.0
libtpu: 0.0.40
codegen_flags: <defaults>
</compile_context>

<pallas_src>
import functools

import jax
import jax.numpy as jnp
from jax.experimental import pallas as pl
from jax.experimental.pallas import tpu as pltpu

# ---- loss weights (mirror the PyTorch module with l1=True, l2=True) ----
LAMBDA1 = 1.0    # L1
LAMBDA2 = 10.0   # MSE
LAMBDA3 = 0.01   # BCE
LAMBDA4 = 0.05   # feature-variance regularizer

_LANES = 128
_LOG_CLAMP = -100.0  # torch.nn.BCELoss clamps log() at -100


def _sum_all(x):
    # lane reduce then sublane reduce -> (1, 1)
    return jnp.sum(x, axis=-1, keepdims=True).sum(axis=0, keepdims=True)


def _neural_fusion_kernel(te_ref, tt_ref, oe_ref, ot_ref, fe_ref, out_ref,
                          acc_t, acc_o, acc_v, *, inv_f, inv_rows, inv_norm):
    i = pl.program_id(0)

    @pl.when(i == 0)
    def _init():
        acc_t[...] = jnp.zeros_like(acc_t)
        acc_o[...] = jnp.zeros_like(acc_o)
        acc_v[...] = jnp.zeros_like(acc_v)

    # --- criterion1 (L1) + criterion2 (MSE): fused weighted elementwise term ---
    d = te_ref[...] - tt_ref[...]
    acc_t[...] += LAMBDA1 * jnp.abs(d) + LAMBDA2 * (d * d)

    # --- criterion3 (BCE, reduction='none' then summed); logs clamped like torch ---
    p = oe_ref[...]
    y = ot_ref[...]
    lp = jnp.maximum(jnp.log(p), _LOG_CLAMP)
    lq = jnp.maximum(jnp.log1p(-p), _LOG_CLAMP)
    acc_o[...] += -(y * lp + (1.0 - y) * lq)

    # --- criterion4 (RegularizeLoss): biased per-row variance over the last dim ---
    f = fe_ref[...]
    s1 = jnp.sum(f, axis=-1, keepdims=True)
    s2 = jnp.sum(f * f, axis=-1, keepdims=True)
    m1 = s1 * inv_f
    var = jnp.maximum(s2 * inv_f - m1 * m1, 0.0)   # (rows, 1), zero rows -> 0
    acc_v[...] += var

    @pl.when(i == pl.num_programs(0) - 1)
    def _finalize():
        l12 = _sum_all(acc_t[...])                                   # L1 + 10*MSE sums
        l3 = _sum_all(acc_o[...])                                    # BCE sum
        l4 = jnp.sum(acc_v[...], axis=0, keepdims=True) * inv_rows   # mean of row vars
        out_ref[...] = (l12 + LAMBDA3 * l3 + LAMBDA4 * l4) * inv_norm


def _round_up(a, b):
    return ((a + b - 1) // b) * b


def _to_rows(x):
    """Flatten to a lane-dense (rows, 128) f32 layout, zero-padded (rows % 8 == 0)."""
    flat = jnp.ravel(x).astype(jnp.float32)
    pad = (-flat.size) % (8 * _LANES)
    if pad:
        flat = jnp.pad(flat, (0, pad))
    return flat.reshape(-1, _LANES)


def _pad_rows(x, rows):
    pad = rows - x.shape[0]
    if pad:
        x = jnp.pad(x, ((0, pad), (0, 0)))
    return x


def neural_fusion_loss(tsdf_est, tsdf_target, occ_est, occ_target, feature_est,
                       *, block_rows=512):
    """Scalar loss = 1*L1 + 10*MSE + 0.01*BCE + 0.05*RegularizeLoss, each summed and
    divided by numel(tsdf_est), matching NeuralFusionLoss.forward."""
    norm = float(tsdf_est.size)

    te = _to_rows(tsdf_est)
    tt = _to_rows(tsdf_target)
    oe = _to_rows(occ_est)
    ot = _to_rows(occ_target)

    f_dim = feature_est.shape[-1]
    n_feat_rows = feature_est.size // f_dim
    fe = jnp.reshape(feature_est, (n_feat_rows, f_dim)).astype(jnp.float32)
    pad_f = (-n_feat_rows) % 8
    if pad_f:
        fe = jnp.pad(fe, ((0, pad_f), (0, 0)))

    mt, mo, mf = te.shape[0], oe.shape[0], fe.shape[0]

    # One 1-D grid over row-blocks; each operand gets its own rows-per-block so a
    # single pallas_call covers all three criteria even if their sizes differ.
    grid = max(1, int(pl.cdiv(max(mt, mo), block_rows)))
    tm = _round_up(int(pl.cdiv(mt, grid)), 8)
    to = _round_up(int(pl.cdiv(mo, grid)), 8)
    tf = _round_up(int(pl.cdiv(mf, grid)), 8)

    te = _pad_rows(te, grid * tm)
    tt = _pad_rows(tt, grid * tm)
    oe = _pad_rows(oe, grid * to)
    ot = _pad_rows(ot, grid * to)
    fe = _pad_rows(fe, grid * tf)

    kernel = functools.partial(
        _neural_fusion_kernel,
        inv_f=float(1.0 / f_dim),
        inv_rows=float(1.0 / n_feat_rows),
        inv_norm=float(1.0 / norm),
    )

    out = pl.pallas_call(
        kernel,
        out_shape=jax.ShapeDtypeStruct((1, 1), jnp.float32),
        grid_spec=pltpu.PrefetchScalarGridSpec(
            num_scalar_prefetch=0,
            grid=(grid,),
            in_specs=[
                pl.BlockSpec((tm, _LANES), lambda i: (i, 0)),
                pl.BlockSpec((tm, _LANES), lambda i: (i, 0)),
                pl.BlockSpec((to, _LANES), lambda i: (i, 0)),
                pl.BlockSpec((to, _LANES), lambda i: (i, 0)),
                pl.BlockSpec((tf, f_dim), lambda i: (i, 0)),
            ],
            out_specs=pl.BlockSpec((1, 1), lambda i: (0, 0)),
            scratch_shapes=[
                pltpu.VMEM((tm, _LANES), jnp.float32),   # L1 + 10*MSE accumulator
                pltpu.VMEM((to, _LANES), jnp.float32),   # BCE accumulator
                pltpu.VMEM((tf, 1), jnp.float32),        # per-row variance accumulator
            ],
        ),
        compiler_params=pltpu.CompilerParams(
            dimension_semantics=("arbitrary",)),
    )(te, tt, oe, ot, fe)
    return out[0, 0]


def _reference(te, tt, oe, ot, fe):
    """Pure-JAX mirror of NeuralFusionLoss.forward (for a correctness check)."""
    norm = te.size
    l1 = jnp.abs(te - tt).sum() / norm
    l2 = ((te - tt) ** 2).sum() / norm
    lp = jnp.maximum(jnp.log(oe), _LOG_CLAMP)
    lq = jnp.maximum(jnp.log1p(-oe), _LOG_CLAMP)
    l3 = (-(ot * lp + (1.0 - ot) * lq)).sum() / norm
    l4 = jnp.var(fe, axis=-1).mean() / norm   # ddof=0 == unbiased=False
    return LAMBDA1 * l1 + LAMBDA2 * l2 + LAMBDA3 * l3 + LAMBDA4 * l4


# TODO(synk): torch BCELoss's runtime check that inputs lie in [0, 1] has no kernel
# equivalent; inputs are assumed to be valid probabilities.

if __name__ == "__main__":
    key = jax.random.PRNGKey(0)
    k1, k2, k3, k4, k5 = jax.random.split(key, 5)
    B, C, H, W, F = 2, 4, 16, 16, 32
    tsdf_est = jax.random.uniform(k1, (B, C, H, W), jnp.float32, minval=-1.0, maxval=1.0)
    tsdf_target = jax.random.uniform(k2, (B, C, H, W), jnp.float32, minval=-1.0, maxval=1.0)
    occ_est = jax.random.uniform(k3, (B, C, H, W), jnp.float32, minval=1e-4, maxval=1.0 - 1e-4)
    occ_target = (jax.random.uniform(k4, (B, C, H, W), jnp.float32) > 0.5).astype(jnp.float32)
    feature_est = jax.random.uniform(k5, (B, C, H, F), jnp.float32)

    loss = neural_fusion_loss(tsdf_est, tsdf_target, occ_est, occ_target, feature_est)
    loss = jax.block_until_ready(loss)

    ref = _reference(tsdf_est, tsdf_target, occ_est, occ_target, feature_est)
    assert jnp.allclose(loss, ref, rtol=1e-4, atol=1e-5), (float(loss), float(ref))
    print("KERNEL_OK")
</pallas_src>

<mosaic_0001>
module attributes {stable_mosaic.version = 11 : i64} {
  func.func @_neural_fusion_kernel(%arg0: i32, %arg1: memref<16x128xf32, #tpu.memory_space<vmem>>, %arg2: memref<16x128xf32, #tpu.memory_space<vmem>>, %arg3: memref<16x128xf32, #tpu.memory_space<vmem>>, %arg4: memref<16x128xf32, #tpu.memory_space<vmem>>, %arg5: memref<128x32xf32, #tpu.memory_space<vmem>>, %arg6: memref<1x1xf32, #tpu.memory_space<vmem>>, %arg7: memref<16x128xf32, #tpu.memory_space<vmem>>, %arg8: memref<16x128xf32, #tpu.memory_space<vmem>>, %arg9: memref<128x1xf32, #tpu.memory_space<vmem>>) attributes {dimension_semantics = [#tpu.dimension_semantics<arbitrary>], iteration_bounds = array<i64: 1>, scalar_prefetch = 0 : i64, scratch_operands = 3 : i64, tpu.core_type = #tpu.core_type<tc>, window_params = [{transform_indices = @transform_0, window_bounds = array<i64: 16, 128>}, {transform_indices = @transform_1, window_bounds = array<i64: 16, 128>}, {transform_indices = @transform_2, window_bounds = array<i64: 16, 128>}, {transform_indices = @transform_3, window_bounds = array<i64: 16, 128>}, {transform_indices = @transform_4, window_bounds = array<i64: 128, 32>}, {pipeline_mode = #tpu.pipeline_mode<synchronous>, transform_indices = @transform_5, window_bounds = array<i64: 1, 1>}]} {
    %c0_i32 = arith.constant 0 : i32
    %0 = arith.cmpi eq, %arg0, %c0_i32 : i32
    %1 = arith.extui %0 : i1 to i32
    %c0_i32_0 = arith.constant 0 : i32
    %2 = arith.cmpi ne, %1, %c0_i32_0 : i32
    scf.if %2 {
      %cst_35 = arith.constant 0.000000e+00 : f32
      %56 = vector.broadcast %cst_35 : f32 to vector<16x128xf32>
      %c0_36 = arith.constant 0 : index
      %c0_37 = arith.constant 0 : index
      %57 = vector.load %arg7[%c0_36, %c0_37] : memref<16x128xf32, #tpu.memory_space<vmem>>, vector<16x128xf32>
      tpu.vector_store %arg7[%c0_36, %c0_37], %56 {strides = array<i32>} : memref<16x128xf32, #tpu.memory_space<vmem>>, vector<16x128xf32>,
      %cst_38 = arith.constant 0.000000e+00 : f32
      %58 = vector.broadcast %cst_38 : f32 to vector<16x128xf32>
      %c0_39 = arith.constant 0 : index
      %c0_40 = arith.constant 0 : index
      %59 = vector.load %arg8[%c0_39, %c0_40] : memref<16x128xf32, #tpu.memory_space<vmem>>, vector<16x128xf32>
      tpu.vector_store %arg8[%c0_39, %c0_40], %58 {strides = array<i32>} : memref<16x128xf32, #tpu.memory_space<vmem>>, vector<16x128xf32>,
      %cst_41 = arith.constant 0.000000e+00 : f32
      %60 = vector.broadcast %cst_41 : f32 to vector<128x1xf32>
      %c0_42 = arith.constant 0 : index
      %c0_43 = arith.constant 0 : index
      %61 = vector.load %arg9[%c0_42, %c0_43] : memref<128x1xf32, #tpu.memory_space<vmem>>, vector<128x1xf32>
      tpu.vector_store %arg9[%c0_42, %c0_43], %60 {strides = array<i32>} : memref<128x1xf32, #tpu.memory_space<vmem>>, vector<128x1xf32>,
    } else {
    }
    %c0 = arith.constant 0 : index
    %c0_1 = arith.constant 0 : index
    %3 = vector.load %arg1[%c0, %c0_1] : memref<16x128xf32, #tpu.memory_space<vmem>>, vector<16x128xf32>
    %c0_2 = arith.constant 0 : index
    %c0_3 = arith.constant 0 : index
    %4 = vector.load %arg2[%c0_2, %c0_3] : memref<16x128xf32, #tpu.memory_space<vmem>>, vector<16x128xf32>
    %5 = arith.subf %3, %4 : vector<16x128xf32>
    %c0_4 = arith.constant 0 : index
    %c0_5 = arith.constant 0 : index
    %6 = vector.load %arg7[%c0_4, %c0_5] : memref<16x128xf32, #tpu.memory_space<vmem>>, vector<16x128xf32>
    %7 = math.absf %5 : vector<16x128xf32>
    %cst = arith.constant 1.000000e+00 : f32
    %8 = vector.broadcast %cst : f32 to vector<16x128xf32>
    %9 = arith.mulf %8, %7 : vector<16x128xf32>
    %10 = arith.mulf %5, %5 : vector<16x128xf32>
    %cst_6 = arith.constant 1.000000e+01 : f32
    %11 = vector.broadcast %cst_6 : f32 to vector<16x128xf32>
    %12 = arith.mulf %11, %10 : vector<16x128xf32>
    %13 = arith.addf %9, %12 : vector<16x128xf32>
    %14 = arith.addf %6, %13 : vector<16x128xf32>
    %c0_7 = arith.constant 0 : index
    %c0_8 = arith.constant 0 : index
    %15 = vector.load %arg7[%c0_7, %c0_8] : memref<16x128xf32, #tpu.memory_space<vmem>>, vector<16x128xf32>
    tpu.vector_store %arg7[%c0_7, %c0_8], %14 {strides = array<i32>} : memref<16x128xf32, #tpu.memory_space<vmem>>, vector<16x128xf32>,
    %c0_9 = arith.constant 0 : index
    %c0_10 = arith.constant 0 : index
    %16 = vector.load %arg3[%c0_9, %c0_10] : memref<16x128xf32, #tpu.memory_space<vmem>>, vector<16x128xf32>
    %c0_11 = arith.constant 0 : index
    %c0_12 = arith.constant 0 : index
    %17 = vector.load %arg4[%c0_11, %c0_12] : memref<16x128xf32, #tpu.memory_space<vmem>>, vector<16x128xf32>
    %18 = math.log %16 : vector<16x128xf32>
    %cst_13 = arith.constant -1.000000e+02 : f32
    %19 = vector.broadcast %cst_13 : f32 to vector<16x128xf32>
    %20 = arith.maximumf %18, %19 : vector<16x128xf32>
    %cst_14 = arith.constant 0.000000e+00 : f32
    %21 = vector.broadcast %cst_14 : f32 to vector<16x128xf32>
    %22 = arith.subf %21, %16 : vector<16x128xf32>
    %23 = math.log1p %22 : vector<16x128xf32>
    %cst_15 = arith.constant -1.000000e+02 : f32
    %24 = vector.broadcast %cst_15 : f32 to vector<16x128xf32>
    %25 = arith.maximumf %23, %24 : vector<16x128xf32>
    %c0_16 = arith.constant 0 : index
    %c0_17 = arith.constant 0 : index
    %26 = vector.load %arg8[%c0_16, %c0_17] : memref<16x128xf32, #tpu.memory_space<vmem>>, vector<16x128xf32>
    %27 = arith.mulf %17, %20 : vector<16x128xf32>
    %cst_18 = arith.constant 1.000000e+00 : f32
    %28 = vector.broadcast %cst_18 : f32 to vector<16x128xf32>
    %29 = arith.subf %28, %17 : vector<16x128xf32>
    %30 = arith.mulf %29, %25 : vector<16x128xf32>
    %31 = arith.addf %27, %30 : vector<16x128xf32>
    %cst_19 = arith.constant 0.000000e+00 : f32
    %32 = vector.broadcast %cst_19 : f32 to vector<16x128xf32>
    %33 = arith.subf %32, %31 : vector<16x128xf32>
    %34 = arith.addf %26, %33 : vector<16x128xf32>
    %c0_20 = arith.constant 0 : index
    %c0_21 = arith.constant 0 : index
    %35 = vector.load %arg8[%c0_20, %c0_21] : memref<16x128xf32, #tpu.memory_space<vmem>>, vector<16x128xf32>
    tpu.vector_store %arg8[%c0_20, %c0_21], %34 {strides = array<i32>} : memref<16x128xf32, #tpu.memory_space<vmem>>, vector<16x128xf32>,
    %c0_22 = arith.constant 0 : index
    %c0_23 = arith.constant 0 : index
    %36 = vector.load %arg5[%c0_22, %c0_23] : memref<128x32xf32, #tpu.memory_space<vmem>>, vector<128x32xf32>
    %cst_24 = arith.constant dense<0.000000e+00> : vector<128xf32>
    %37 = vector.multi_reduction <add>, %36, %cst_24 [1] : vector<128x32xf32> to vector<128xf32>
    %38 = vector.shape_cast %37 : vector<128xf32> to vector<128x1xf32>
    %39 = arith.mulf %36, %36 : vector<128x32xf32>
    %cst_25 = arith.constant dense<0.000000e+00> : vector<128xf32>
    %40 = vector.multi_reduction <add>, %39, %cst_25 [1] : vector<128x32xf32> to vector<128xf32>
    %41 = vector.shape_cast %40 : vector<128xf32> to vector<128x1xf32>
    %cst_26 = arith.constant 3.125000e-02 : f32
    %42 = vector.broadcast %cst_26 : f32 to vector<128x1xf32>
    %43 = arith.mulf %38, %42 : vector<128x1xf32>
    %cst_27 = arith.constant 3.125000e-02 : f32
    %44 = vector.broadcast %cst_27 : f32 to vector<128x1xf32>
    %45 = arith.mulf %41, %44 : vector<128x1xf32>
    %46 = arith.mulf %43, %43 : vector<128x1xf32>
    %47 = arith.subf %45, %46 : vector<128x1xf32>
    %cst_28 = arith.constant 0.000000e+00 : f32
    %48 = vector.broadcast %cst_28 : f32 to vector<128x1xf32>
    %49 = arith.maximumf %47, %48 : vector<128x1xf32>
    %c0_29 = arith.constant 0 : index
    %c0_30 = arith.constant 0 : index
    %50 = vector.load %arg9[%c0_29, %c0_30] : memref<128x1xf32, #tpu.memory_space<vmem>>, vector<128x1xf32>
    %51 = arith.addf %50, %49 : vector<128x1xf32>
    %c0_31 = arith.constant 0 : index
    %c0_32 = arith.constant 0 : index
    %52 = vector.load %arg9[%c0_31, %c0_32] : memref<128x1xf32, #tpu.memory_space<vmem>>, vector<128x1xf32>
    tpu.vector_store %arg9[%c0_31, %c0_32], %51 {strides = array<i32>} : memref<128x1xf32, #tpu.memory_space<vmem>>, vector<128x1xf32>,
    %c0_i32_33 = arith.constant 0 : i32
    %53 = arith.cmpi eq, %arg0, %c0_i32_33 : i32
    %54 = arith.extui %53 : i1 to i32
    %c0_i32_34 = arith.constant 0 : i32
    %55 = arith.cmpi ne, %54, %c0_i32_34 : i32
    scf.if %55 {
      %c0_35 = arith.constant 0 : index
      %c0_36 = arith.constant 0 : index
      %56 = vector.load %arg7[%c0_35, %c0_36] : memref<16x128xf32, #tpu.memory_space<vmem>>, vector<16x128xf32>
      %cst_37 = arith.constant dense<0.000000e+00> : vector<16xf32>
      %57 = vector.multi_reduction <add>, %56, %cst_37 [1] : vector<16x128xf32> to vector<16xf32>
      %58 = vector.shape_cast %57 : vector<16xf32> to vector<16x1xf32>
      %cst_38 = arith.constant dense<0.000000e+00> : vector<1xf32>
      %59 = vector.multi_reduction <add>, %58, %cst_38 [0] : vector<16x1xf32> to vector<1xf32>
      %60 = vector.shape_cast %59 : vector<1xf32> to vector<1x1xf32>
      %c0_39 = arith.constant 0 : index
      %c0_40 = arith.constant 0 : index
      %61 = vector.load %arg8[%c0_39, %c0_40] : memref<16x128xf32, #tpu.memory_space<vmem>>, vector<16x128xf32>
      %cst_41 = arith.constant dense<0.000000e+00> : vector<16xf32>
      %62 = vector.multi_reduction <add>, %61, %cst_41 [1] : vector<16x128xf32> to vector<16xf32>
      %63 = vector.shape_cast %62 : vector<16xf32> to vector<16x1xf32>
      %cst_42 = arith.constant dense<0.000000e+00> : vector<1xf32>
      %64 = vector.multi_reduction <add>, %63, %cst_42 [0] : vector<16x1xf32> to vector<1xf32>
      %65 = vector.shape_cast %64 : vector<1xf32> to vector<1x1xf32>
      %c0_43 = arith.constant 0 : index
      %c0_44 = arith.constant 0 : index
      %66 = vector.load %arg9[%c0_43, %c0_44] : memref<128x1xf32, #tpu.memory_space<vmem>>, vector<128x1xf32>
      %cst_45 = arith.constant dense<0.000000e+00> : vector<1xf32>
      %67 = vector.multi_reduction <add>, %66, %cst_45 [0] : vector<128x1xf32> to vector<1xf32>
      %68 = vector.shape_cast %67 : vector<1xf32> to vector<1x1xf32>
      %cst_46 = arith.constant 7.812500e-03 : f32
      %69 = vector.broadcast %cst_46 : f32 to vector<1x1xf32>
      %70 = arith.mulf %68, %69 : vector<1x1xf32>
      %cst_47 = arith.constant 0.00999999977 : f32
      %71 = vector.broadcast %cst_47 : f32 to vector<1x1xf32>
      %72 = arith.mulf %71, %65 : vector<1x1xf32>
      %73 = arith.addf %60, %72 : vector<1x1xf32>
      %cst_48 = arith.constant 5.000000e-02 : f32
      %74 = vector.broadcast %cst_48 : f32 to vector<1x1xf32>
      %75 = arith.mulf %74, %70 : vector<1x1xf32>
      %76 = arith.addf %73, %75 : vector<1x1xf32>
      %cst_49 = arith.constant 4.8828125E-4 : f32
      %77 = vector.broadcast %cst_49 : f32 to vector<1x1xf32>
      %78 = arith.mulf %76, %77 : vector<1x1xf32>
      %c0_50 = arith.constant 0 : index
      %c0_51 = arith.constant 0 : index
      %79 = vector.load %arg6[%c0_50, %c0_51] : memref<1x1xf32, #tpu.memory_space<vmem>>, vector<1x1xf32>
      tpu.vector_store %arg6[%c0_50, %c0_51], %78 {strides = array<i32>} : memref<1x1xf32, #tpu.memory_space<vmem>>, vector<1x1xf32>,
    } else {
    }
    return
  }
  func.func @transform_0(%arg0: i32) -> (i32, i32) {
    %c0_i32 = arith.constant 0 : i32
    %c0_i32_0 = arith.constant 0 : i32
    return %arg0, %c0_i32 : i32, i32
  }
  func.func @transform_1(%arg0: i32) -> (i32, i32) {
    %c0_i32 = arith.constant 0 : i32
    %c0_i32_0 = arith.constant 0 : i32
    return %arg0, %c0_i32 : i32, i32
  }
  func.func @transform_2(%arg0: i32) -> (i32, i32) {
    %c0_i32 = arith.constant 0 : i32
    %c0_i32_0 = arith.constant 0 : i32
    return %arg0, %c0_i32 : i32, i32
  }
  func.func @transform_3(%arg0: i32) -> (i32, i32) {
    %c0_i32 = arith.constant 0 : i32
    %c0_i32_0 = arith.constant 0 : i32
    return %arg0, %c0_i32 : i32, i32
  }
  func.func @transform_4(%arg0: i32) -> (i32, i32) {
    %c0_i32 = arith.constant 0 : i32
    %c0_i32_0 = arith.constant 0 : i32
    return %arg0, %c0_i32 : i32, i32
  }
  func.func @transform_5(%arg0: i32) -> (i32, i32) {
    %c0_i32 = arith.constant 0 : i32
    %c0_i32_0 = arith.constant 0 : i32
    %c0_i32_1 = arith.constant 0 : i32
    return %c0_i32, %c0_i32_0 : i32, i32
  }
}

</mosaic_0001>

<llo_original>
// kernel: tpu_custom_call.1
$region0: #{tpu_custom_call.1}
  #allocation0 [shape = 'u32[]', space=smem, size = 0x4, offset = 0x4, fixed_abs, tag = 'smem constant byte address 0x4 - core index']
  #allocation1 [shape = 'u32[144,128]{1,0:T(1,128)}', space=vmem, size = 0x12000, scoped, tag = 'internal scratch']
  #allocation2 [shape = 'f32[16,128]{1,0:T(8,128)}', space=vmem, size = 0x2000, scoped, tag = 'scratch operand']
  #allocation3 [shape = 'f32[16,128]{1,0:T(8,128)}', space=vmem, size = 0x2000, scoped, tag = 'scratch operand']
  #allocation4 [shape = 'f32[128,1]{1,0:T(8,128)}', space=vmem, size = 0x10000, scoped, tag = 'scratch operand']
  %s0 = inlined_call_operand.vmem [shape: f32[16,128], index: 0, kind: input, shape index: {}]
  %s1 = inlined_call_operand.vmem [shape: f32[16,128], index: 1, kind: input, shape index: {}]
  %s2 = inlined_call_operand.vmem [shape: f32[16,128], index: 2, kind: input, shape index: {}]
  %s3 = inlined_call_operand.vmem [shape: f32[16,128], index: 3, kind: input, shape index: {}]
  %s4 = inlined_call_operand.vmem [shape: f32[128,32], index: 4, kind: input, shape index: {}]
  %s5 = inlined_call_operand.hbm [shape: f32[1,1], index: 5, kind: output, shape index: {}]
  %s6 = sld [smem:[#allocation0]]
  $region38: #{tpu_custom_call.1} parent=0
    _
  %s8 = ssub.s32 1, %s6
  %s9 = scalar_select 0, %s8, %s6
  $region1: #{tpu_custom_call.1} parent=0
    #allocation5 [shape = 'u8[512]{0}', space=vmem, size = 0x400, scoped, tag = 'output window, operand 0, single buffered']
    #allocation6 [shape = 's32[1]{0}', space=sflag, size = 0x4, scoped, tag = 'scoped memory for tpu_custom_call.1']
    %10 = vsyncpa [#allocation6], 0
    // Predicated region
    $region2: #{tpu_custom_call.1} parent=1 // pred_check
      _
    $region3: #{tpu_custom_call.1} parent=1 // pred_check_branch
      %12 = sbr.rel (0) target = $region5
    $region4: #{tpu_custom_call.1} parent=1 // pred_region
      _
    $region5: #{tpu_custom_call.1} parent=1 // pred_fallthru
      _
    // Predicated region
    $region6: #{tpu_custom_call.1} parent=1 // pred_check
      _
    $region7: #{tpu_custom_call.1} parent=1 // pred_check_branch
      %14 = sbr.rel (0) target = $region9
    $region8: #{tpu_custom_call.1} parent=1 // pred_region
      _
    $region9: #{tpu_custom_call.1} parent=1 // pred_fallthru
      _
    // Predicated region
    $region10: #{tpu_custom_call.1} parent=1 // pred_check
      _
    $region11: #{tpu_custom_call.1} parent=1 // pred_check_branch
      %16 = sbr.rel (0) target = $region13
    $region12: #{tpu_custom_call.1} parent=1 // pred_region
      _
    $region13: #{tpu_custom_call.1} parent=1 // pred_fallthru
      _
    // Predicated region
    $region14: #{tpu_custom_call.1} parent=1 // pred_check
      _
    $region15: #{tpu_custom_call.1} parent=1 // pred_check_branch
      %18 = sbr.rel (0) target = $region17
    $region16: #{tpu_custom_call.1} parent=1 // pred_region
      _
    $region17: #{tpu_custom_call.1} parent=1 // pred_fallthru
      _
    // Predicated region
    $region18: #{tpu_custom_call.1} parent=1 // pred_check
      _
    $region19: #{tpu_custom_call.1} parent=1 // pred_check_branch
      %20 = sbr.rel (0) target = $region21
    $region20: #{tpu_custom_call.1} parent=1 // pred_region
      _
    $region21: #{tpu_custom_call.1} parent=1 // pred_fallthru
      _
    %p21 = scmp.eq.s32.totalorder 0, 0
    // Predicated region
    $region22: #{tpu_custom_call.1} parent=1 // pred_check
      %p22 = pneg %p21
    $region23: #{tpu_custom_call.1} parent=1 // pred_check_branch
      %24 = sbr.rel (%p22) target = $region25
    $region24: #{tpu_custom_call.1} parent=1 // pred_region
      %25 = vst [vmem:[#allocation2] sm:$0xff] 0.0
      %26 = vst [vmem:[#allocation2 + $0x8] sm:$0xff] 0.0
      %27 = vst [vmem:[#allocation3] sm:$0xff] 0.0
      %28 = vst [vmem:[#allocation3 + $0x8] sm:$0xff] 0.0
      %vm29 = vcmask 7168
      %30 = vst.msk [vmem:[#allocation4] sm:$0xff] %vm29, 0.0
      %31 = vst.msk [vmem:[#allocation4 + $0x8] sm:$0xff] %vm29, 0.0
      %32 = vst.msk [vmem:[#allocation4 + $0x10] sm:$0xff] %vm29, 0.0
      %33 = vst.msk [vmem:[#allocation4 + $0x18] sm:$0xff] %vm29, 0.0
      %34 = vst.msk [vmem:[#allocation4 + $0x20] sm:$0xff] %vm29, 0.0
      %35 = vst.msk [vmem:[#allocation4 + $0x28] sm:$0xff] %vm29, 0.0
      %36 = vst.msk [vmem:[#allocation4 + $0x30] sm:$0xff] %vm29, 0.0
      %37 = vst.msk [vmem:[#allocation4 + $0x38] sm:$0xff] %vm29, 0.0
      %38 = vst.msk [vmem:[#allocation4 + $0x40] sm:$0xff] %vm29, 0.0
      %39 = vst.msk [vmem:[#allocation4 + $0x48] sm:$0xff] %vm29, 0.0
      %40 = vst.msk [vmem:[#allocation4 + $0x50] sm:$0xff] %vm29, 0.0
      %41 = vst.msk [vmem:[#allocation4 + $0x58] sm:$0xff] %vm29, 0.0
      %42 = vst.msk [vmem:[#allocation4 + $0x60] sm:$0xff] %vm29, 0.0
      %43 = vst.msk [vmem:[#allocation4 + $0x68] sm:$0xff] %vm29, 0.0
      %44 = vst.msk [vmem:[#allocation4 + $0x70] sm:$0xff] %vm29, 0.0
      %45 = vst.msk [vmem:[#allocation4 + $0x78] sm:$0xff] %vm29, 0.0
    $region25: #{tpu_custom_call.1} parent=1 // pred_fallthru
      _
    %v46 = vld [vmem:[%s0] sm:$0xff]
    %v47 = vld [vmem:[%s0 + $0x8] sm:$0xff]
    %v48 = vld [vmem:[%s1] sm:$0xff]
    %v49 = vld [vmem:[%s1 + $0x8] sm:$0xff]
    %v50 = vsub.f32 %v46, %v48
    %v51 = vsub.f32 %v47, %v49
    %v52 = vld [vmem:[#allocation2] sm:$0xff]
    %v53 = vld [vmem:[#allocation2 + $0x8] sm:$0xff]
    %v54 = vand.u32 2147483647, %v50
    %v55 = vand.u32 2147483647, %v51
    %v56 = vmul.f32 %v50, %v50
    %v57 = vmul.f32 %v51, %v51
    %v58 = vmul.f32 %v56, 10.0
    %v59 = vmul.f32 %v57, 10.0
    %v60 = vadd.f32 %v54, %v58
    %v61 = vadd.f32 %v55, %v59
    %v62 = vadd.f32 %v52, %v60
    %v63 = vadd.f32 %v53, %v61
    %64 = vst [vmem:[#allocation2] sm:$0xff] %v62
    %65 = vst [vmem:[#allocation2 + $0x8] sm:$0xff] %v63
    %v66 = vld [vmem:[%s2] sm:$0xff]
    %v67 = vld [vmem:[%s2 + $0x8] sm:$0xff]
    %v68 = vld [vmem:[%s3] sm:$0xff]
    %v69 = vld [vmem:[%s3 + $0x8] sm:$0xff]
    %v70 = vlog2.pop %v66
    %v71 = vmul.f32 %v70, 0.6931472
    %v72 = vlog2.pop %v67
    %v73 = vmul.f32 %v72, 0.6931472
    %v74 = vmax.f32 %v71, -100.0
    %v75 = vmax.f32 %v73, -100.0
    %v76 = vsub.f32 0.0, %v66
    %v77 = vsub.f32 0.0, %v67
    %v78 = vadd.f32 %v76, 1.0
    %v79 = vlog2.pop %v78
    %v80 = vmul.f32 %v79, 0.6931472
    %v81 = vmul.f32 -0.5, %v76
    %v82 = vadd.f32 %v81, 1.0
    %v83 = vmul.f32 %v82, %v76
    %v84 = vand.u32 2147483647, %v76
    %vm85 = vcmp.lt.f32.partialorder %v84, 0.0004427343
    %v86 = vsel %vm85, %v83, %v80
    %v87 = vadd.f32 %v77, 1.0
    %v88 = vlog2.pop %v87
    %v89 = vmul.f32 %v88, 0.6931472
    %v90 = vmul.f32 -0.5, %v77
    %v91 = vadd.f32 %v90, 1.0
    %v92 = vmul.f32 %v91, %v77
    %v93 = vand.u32 2147483647, %v77
    %vm94 = vcmp.lt.f32.partialorder %v93, 0.0004427343
    %v95 = vsel %vm94, %v92, %v89
    %v96 = vmax.f32 %v86, -100.0
    %v97 = vmax.f32 %v95, -100.0
    %v98 = vld [vmem:[#allocation3] sm:$0xff]
    %v99 = vld [vmem:[#allocation3 + $0x8] sm:$0xff]
    %v100 = vmul.f32 %v68, %v74
    %v101 = vmul.f32 %v69, %v75
    %v102 = vsub.f32 1.0, %v68
    %v103 = vsub.f32 1.0, %v69
    %v104 = vmul.f32 %v102, %v96
    %v105 = vmul.f32 %v103, %v97
    %v106 = vadd.f32 %v100, %v104
    %v107 = vadd.f32 %v101, %v105
    %v108 = vsub.f32 0.0, %v106
    %v109 = vsub.f32 0.0, %v107
    %v110 = vadd.f32 %v98, %v108
    %v111 = vadd.f32 %v99, %v109
    %112 = vst [vmem:[#allocation3] sm:$0xff] %v110
    %113 = vst [vmem:[#allocation3 + $0x8] sm:$0xff] %v111
    %v114 = vld [vmem:[%s4] sm:$0xff]
    %v115 = vld [vmem:[%s4 + $0x8] sm:$0xff]
    %v116 = vld [vmem:[%s4 + $0x10] sm:$0xff]
    %v117 = vld [vmem:[%s4 + $0x18] sm:$0xff]
    %v118 = vld [vmem:[%s4 + $0x20] sm:$0xff]
    %v119 = vld [vmem:[%s4 + $0x28] sm:$0xff]
    %v120 = vld [vmem:[%s4 + $0x30] sm:$0xff]
    %v121 = vld [vmem:[%s4 + $0x38] sm:$0xff]
    %v122 = vld [vmem:[%s4 + $0x40] sm:$0xff]
    %v123 = vld [vmem:[%s4 + $0x48] sm:$0xff]
    %v124 = vld [vmem:[%s4 + $0x50] sm:$0xff]
    %v125 = vld [vmem:[%s4 + $0x58] sm:$0xff]
    %v126 = vld [vmem:[%s4 + $0x60] sm:$0xff]
    %v127 = vld [vmem:[%s4 + $0x68] sm:$0xff]
    %v128 = vld [vmem:[%s4 + $0x70] sm:$0xff]
    %v129 = vld [vmem:[%s4 + $0x78] sm:$0xff]
    %vm130 = vcmask 261120
    %v131 = vsel %vm130, %v114, 0.0
    %132 = vadd.xlane.f32.xlu0 %v131
    %v133 = vpop.xlane.xlu0 %132
    %v134 = vsel %vm130, %v115, 0.0
    %135 = vadd.xlane.f32.xlu0 %v134
    %v136 = vpop.xlane.xlu0 %135
    %v137 = vsel %vm130, %v116, 0.0
    %138 = vadd.xlane.f32.xlu0 %v137
    %v139 = vpop.xlane.xlu0 %138
    %v140 = vsel %vm130, %v117, 0.0
    %141 = vadd.xlane.f32.xlu0 %v140
    %v142 = vpop.xlane.xlu0 %141
    %v143 = vsel %vm130, %v118, 0.0
    %144 = vadd.xlane.f32.xlu0 %v143
    %v145 = vpop.xlane.xlu0 %144
    %v146 = vsel %vm130, %v119, 0.0
    %147 = vadd.xlane.f32.xlu0 %v146
    %v148 = vpop.xlane.xlu0 %147
    %v149 = vsel %vm130, %v120, 0.0
    %150 = vadd.xlane.f32.xlu0 %v149
    %v151 = vpop.xlane.xlu0 %150
    %v152 = vsel %vm130, %v121, 0.0
    %153 = vadd.xlane.f32.xlu0 %v152
    %v154 = vpop.xlane.xlu0 %153
    %v155 = vsel %vm130, %v122, 0.0
    %156 = vadd.xlane.f32.xlu0 %v155
    %v157 = vpop.xlane.xlu0 %156
    %v158 = vsel %vm130, %v123, 0.0
    %159 = vadd.xlane.f32.xlu0 %v158
    %v160 = vpop.xlane.xlu0 %159
    %v161 = vsel %vm130, %v124, 0.0
    %162 = vadd.xlane.f32.xlu0 %v161
    %v163 = vpop.xlane.xlu0 %162
    %v164 = vsel %vm130, %v125, 0.0
    %165 = vadd.xlane.f32.xlu0 %v164
    %v166 = vpop.xlane.xlu0 %165
    %v167 = vsel %vm130, %v126, 0.0
    %168 = vadd.xlane.f32.xlu0 %v167
    %v169 = vpop.xlane.xlu0 %168
    %v170 = vsel %vm130, %v127, 0.0
    %171 = vadd.xlane.f32.xlu0 %v170
    %v172 = vpop.xlane.xlu0 %171
    %v173 = vsel %vm130, %v128, 0.0
    %174 = vadd.xlane.f32.xlu0 %v173
    %v175 = vpop.xlane.xlu0 %174
    %v176 = vsel %vm130, %v129, 0.0
    %177 = vadd.xlane.f32.xlu0 %v176
    %v178 = vpop.xlane.xlu0 %177
    %v179 = vmul.f32 %v114, %v114
    %v180 = vmul.f32 %v115, %v115
    %v181 = vmul.f32 %v116, %v116
    %v182 = vmul.f32 %v117, %v117
    %v183 = vmul.f32 %v118, %v118
    %v184 = vmul.f32 %v119, %v119
    %v185 = vmul.f32 %v120, %v120
    %v186 = vmul.f32 %v121, %v121
    %v187 = vmul.f32 %v122, %v122
    %v188 = vmul.f32 %v123, %v123
    %v189 = vmul.f32 %v124, %v124
    %v190 = vmul.f32 %v125, %v125
    %v191 = vmul.f32 %v126, %v126
    %v192 = vmul.f32 %v127, %v127
    %v193 = vmul.f32 %v128, %v128
    %v194 = vmul.f32 %v129, %v129
    %v195 = vsel %vm130, %v179, 0.0
    %196 = vadd.xlane.f32.xlu0 %v195
    %v197 = vpop.xlane.xlu0 %196
    %v198 = vsel %vm130, %v180, 0.0
    %199 = vadd.xlane.f32.xlu0 %v198
    %v200 = vpop.xlane.xlu0 %199
    %v201 = vsel %vm130, %v181, 0.0
    %202 = vadd.xlane.f32.xlu0 %v201
    %v203 = vpop.xlane.xlu0 %202
    %v204 = vsel %vm130, %v182, 0.0
    %205 = vadd.xlane.f32.xlu0 %v204
    %v206 = vpop.xlane.xlu0 %205
    %v207 = vsel %vm130, %v183, 0.0
    %208 = vadd.xlane.f32.xlu0 %v207
    %v209 = vpop.xlane.xlu0 %208
    %v210 = vsel %vm130, %v184, 0.0
    %211 = vadd.xlane.f32.xlu0 %v210
    %v212 = vpop.xlane.xlu0 %211
    %v213 = vsel %vm130, %v185, 0.0
    %214 = vadd.xlane.f32.xlu0 %v213
    %v215 = vpop.xlane.xlu0 %214
    %v216 = vsel %vm130, %v186, 0.0
    %217 = vadd.xlane.f32.xlu0 %v216
    %v218 = vpop.xlane.xlu0 %217
    %v219 = vsel %vm130, %v187, 0.0
    %220 = vadd.xlane.f32.xlu0 %v219
    %v221 = vpop.xlane.xlu0 %220
    %v222 = vsel %vm130, %v188, 0.0
    %223 = vadd.xlane.f32.xlu0 %v222
    %v224 = vpop.xlane.xlu0 %223
    %v225 = vsel %vm130, %v189, 0.0
    %226 = vadd.xlane.f32.xlu0 %v225
    %v227 = vpop.xlane.xlu0 %226
    %v228 = vsel %vm130, %v190, 0.0
    %229 = vadd.xlane.f32.xlu0 %v228
    %v230 = vpop.xlane.xlu0 %229
    %v231 = vsel %vm130, %v191, 0.0
    %232 = vadd.xlane.f32.xlu0 %v231
    %v233 = vpop.xlane.xlu0 %232
    %v234 = vsel %vm130, %v192, 0.0
    %235 = vadd.xlane.f32.xlu0 %v234
    %v236 = vpop.xlane.xlu0 %235
    %v237 = vsel %vm130, %v193, 0.0
    %238 = vadd.xlane.f32.xlu0 %v237
    %v239 = vpop.xlane.xlu0 %238
    %v240 = vsel %vm130, %v194, 0.0
    %241 = vadd.xlane.f32.xlu0 %v240
    %v242 = vpop.xlane.xlu0 %241
    %v243 = vmul.f32 %v133, 0.03125
    %v244 = vmul.f32 %v136, 0.03125
    %v245 = vmul.f32 %v139, 0.03125
    %v246 = vmul.f32 %v142, 0.03125
    %v247 = vmul.f32 %v145, 0.03125
    %v248 = vmul.f32 %v148, 0.03125
    %v249 = vmul.f32 %v151, 0.03125
    %v250 = vmul.f32 %v154, 0.03125
    %v251 = vmul.f32 %v157, 0.03125
    %v252 = vmul.f32 %v160, 0.03125
    %v253 = vmul.f32 %v163, 0.03125
    %v254 = vmul.f32 %v166, 0.03125
    %v255 = vmul.f32 %v169, 0.03125
    %v256 = vmul.f32 %v172, 0.03125
    %v257 = vmul.f32 %v175, 0.03125
    %v258 = vmul.f32 %v178, 0.03125
    %v259 = vmul.f32 %v197, 0.03125
    %v260 = vmul.f32 %v200, 0.03125
    %v261 = vmul.f32 %v203, 0.03125
    %v262 = vmul.f32 %v206, 0.03125
    %v263 = vmul.f32 %v209, 0.03125
    %v264 = vmul.f32 %v212, 0.03125
    %v265 = vmul.f32 %v215, 0.03125
    %v266 = vmul.f32 %v218, 0.03125
    %v267 = vmul.f32 %v221, 0.03125
    %v268 = vmul.f32 %v224, 0.03125
    %v269 = vmul.f32 %v227, 0.03125
    %v270 = vmul.f32 %v230, 0.03125
    %v271 = vmul.f32 %v233, 0.03125
    %v272 = vmul.f32 %v236, 0.03125
    %v273 = vmul.f32 %v239, 0.03125
    %v274 = vmul.f32 %v242, 0.03125
    %v275 = vmul.f32 %v243, %v243
    %v276 = vmul.f32 %v244, %v244
    %v277 = vmul.f32 %v245, %v245
    %v278 = vmul.f32 %v246, %v246
    %v279 = vmul.f32 %v247, %v247
    %v280 = vmul.f32 %v248, %v248
    %v281 = vmul.f32 %v249, %v249
    %v282 = vmul.f32 %v250, %v250
    %v283 = vmul.f32 %v251, %v251
    %v284 = vmul.f32 %v252, %v252
    %v285 = vmul.f32 %v253, %v253
    %v286 = vmul.f32 %v254, %v254
    %v287 = vmul.f32 %v255, %v255
    %v288 = vmul.f32 %v256, %v256
    %v289 = vmul.f32 %v257, %v257
    %v290 = vmul.f32 %v258, %v258
    %v291 = vsub.f32 %v259, %v275
    %v292 = vsub.f32 %v260, %v276
    %v293 = vsub.f32 %v261, %v277
    %v294 = vsub.f32 %v262, %v278
    %v295 = vsub.f32 %v263, %v279
    %v296 = vsub.f32 %v264, %v280
    %v297 = vsub.f32 %v265, %v281
    %v298 = vsub.f32 %v266, %v282
    %v299 = vsub.f32 %v267, %v283
    %v300 = vsub.f32 %v268, %v284
    %v301 = vsub.f32 %v269, %v285
    %v302 = vsub.f32 %v270, %v286
    %v303 = vsub.f32 %v271, %v287
    %v304 = vsub.f32 %v272, %v288
    %v305 = vsub.f32 %v273, %v289
    %v306 = vsub.f32 %v274, %v290
    %v307 = vmax.f32 %v291, 0.0
    %v308 = vmax.f32 %v292, 0.0
    %v309 = vmax.f32 %v293, 0.0
    %v310 = vmax.f32 %v294, 0.0
    %v311 = vmax.f32 %v295, 0.0
    %v312 = vmax.f32 %v296, 0.0
    %v313 = vmax.f32 %v297, 0.0
    %v314 = vmax.f32 %v298, 0.0
    %v315 = vmax.f32 %v299, 0.0
    %v316 = vmax.f32 %v300, 0.0
    %v317 = vmax.f32 %v301, 0.0
    %v318 = vmax.f32 %v302, 0.0
    %v319 = vmax.f32 %v303, 0.0
    %v320 = vmax.f32 %v304, 0.0
    %v321 = vmax.f32 %v305, 0.0
    %v322 = vmax.f32 %v306, 0.0
    %v323 = vld [vmem:[#allocation4] sm:$0xff]
    %v324 = vld [vmem:[#allocation4 + $0x8] sm:$0xff]
    %v325 = vld [vmem:[#allocation4 + $0x10] sm:$0xff]
    %v326 = vld [vmem:[#allocation4 + $0x18] sm:$0xff]
    %v327 = vld [vmem:[#allocation4 + $0x20] sm:$0xff]
    %v328 = vld [vmem:[#allocation4 + $0x28] sm:$0xff]
    %v329 = vld [vmem:[#allocation4 + $0x30] sm:$0xff]
    %v330 = vld [vmem:[#allocation4 + $0x38] sm:$0xff]
    %v331 = vld [vmem:[#allocation4 + $0x40] sm:$0xff]
    %v332 = vld [vmem:[#allocation4 + $0x48] sm:$0xff]
    %v333 = vld [vmem:[#allocation4 + $0x50] sm:$0xff]
    %v334 = vld [vmem:[#allocation4 + $0x58] sm:$0xff]
    %v335 = vld [vmem:[#allocation4 + $0x60] sm:$0xff]
    %v336 = vld [vmem:[#allocation4 + $0x68] sm:$0xff]
    %v337 = vld [vmem:[#allocation4 + $0x70] sm:$0xff]
    %v338 = vld [vmem:[#allocation4 + $0x78] sm:$0xff]
    %v339 = vadd.f32 %v323, %v307
    %v340 = vadd.f32 %v324, %v308
    %v341 = vadd.f32 %v325, %v309
    %v342 = vadd.f32 %v326, %v310
    %v343 = vadd.f32 %v327, %v311
    %v344 = vadd.f32 %v328, %v312
    %v345 = vadd.f32 %v329, %v313
    %v346 = vadd.f32 %v330, %v314
    %v347 = vadd.f32 %v331, %v315
    %v348 = vadd.f32 %v332, %v316
    %v349 = vadd.f32 %v333, %v317
    %v350 = vadd.f32 %v334, %v318
    %v351 = vadd.f32 %v335, %v319
    %v352 = vadd.f32 %v336, %v320
    %v353 = vadd.f32 %v337, %v321
    %v354 = vadd.f32 %v338, %v322
    %vm355 = vcmask 7168
    %356 = vst.msk [vmem:[#allocation4] sm:$0xff] %vm355, %v339
    %357 = vst.msk [vmem:[#allocation4 + $0x8] sm:$0xff] %vm355, %v340
    %358 = vst.msk [vmem:[#allocation4 + $0x10] sm:$0xff] %vm355, %v341
    %359 = vst.msk [vmem:[#allocation4 + $0x18] sm:$0xff] %vm355, %v342
    %360 = vst.msk [vmem:[#allocation4 + $0x20] sm:$0xff] %vm355, %v343
    %361 = vst.msk [vmem:[#allocation4 + $0x28] sm:$0xff] %vm355, %v344
    %362 = vst.msk [vmem:[#allocation4 + $0x30] sm:$0xff] %vm355, %v345
    %363 = vst.msk [vmem:[#allocation4 + $0x38] sm:$0xff] %vm355, %v346
    %364 = vst.msk [vmem:[#allocation4 + $0x40] sm:$0xff] %vm355, %v347
    %365 = vst.msk [vmem:[#allocation4 + $0x48] sm:$0xff] %vm355, %v348
    %366 = vst.msk [vmem:[#allocation4 + $0x50] sm:$0xff] %vm355, %v349
    %367 = vst.msk [vmem:[#allocation4 + $0x58] sm:$0xff] %vm355, %v350
    %368 = vst.msk [vmem:[#allocation4 + $0x60] sm:$0xff] %vm355, %v351
    %369 = vst.msk [vmem:[#allocation4 + $0x68] sm:$0xff] %vm355, %v352
    %370 = vst.msk [vmem:[#allocation4 + $0x70] sm:$0xff] %vm355, %v353
    %371 = vst.msk [vmem:[#allocation4 + $0x78] sm:$0xff] %vm355, %v354
    // Predicated region
    $region26: #{tpu_custom_call.1} parent=1 // pred_check
      %p372 = pneg %p21
    $region27: #{tpu_custom_call.1} parent=1 // pred_check_branch
      %374 = sbr.rel (%p372) target = $region29
    $region28: #{tpu_custom_call.1} parent=1 // pred_region
      %v375 = vld [vmem:[#allocation2] sm:$0xff]
      %v376 = vld [vmem:[#allocation2 + $0x8] sm:$0xff]
      %377 = vadd.xlane.f32.xlu0 %v375
      %v378 = vpop.xlane.xlu0 %377
      %379 = vadd.xlane.f32.xlu0 %v376
      %v380 = vpop.xlane.xlu0 %379
      %v381 = vadd.f32 %v378, %v380
      %v382 = vrot.slane %v381, 4
      %v383 = vadd.f32 %v381, %v382
      %v384 = vrot.slane %v383, 2
      %v385 = vadd.f32 %v383, %v384
      %v386 = vrot.slane %v385, 1
      %v387 = vadd.f32 %v385, %v386
      %v388 = vld [vmem:[#allocation3] sm:$0xff]
      %v389 = vld [vmem:[#allocation3 + $0x8] sm:$0xff]
      %390 = vadd.xlane.f32.xlu0 %v388
      %v391 = vpop.xlane.xlu0 %390
      %392 = vadd.xlane.f32.xlu0 %v389
      %v393 = vpop.xlane.xlu0 %392
      %v394 = vadd.f32 %v391, %v393
      %v395 = vrot.slane %v394, 4
      %v396 = vadd.f32 %v394, %v395
      %v397 = vrot.slane %v396, 2
      %v398 = vadd.f32 %v396, %v397
      %v399 = vrot.slane %v398, 1
      %v400 = vadd.f32 %v398, %v399
      %v401 = vld [vmem:[#allocation4] sm:$0xff]
      %v402 = vld [vmem:[#allocation4 + $0x8] sm:$0xff]
      %v403 = vld [vmem:[#allocation4 + $0x10] sm:$0xff]
      %v404 = vld [vmem:[#allocation4 + $0x18] sm:$0xff]
      %v405 = vld [vmem:[#allocation4 + $0x20] sm:$0xff]
      %v406 = vld [vmem:[#allocation4 + $0x28] sm:$0xff]
      %v407 = vld [vmem:[#allocation4 + $0x30] sm:$0xff]
      %v408 = vld [vmem:[#allocation4 + $0x38] sm:$0xff]
      %v409 = vld [vmem:[#allocation4 + $0x40] sm:$0xff]
      %v410 = vld [vmem:[#allocation4 + $0x48] sm:$0xff]
      %v411 = vld [vmem:[#allocation4 + $0x50] sm:$0xff]
      %v412 = vld [vmem:[#allocation4 + $0x58] sm:$0xff]
      %v413 = vld [vmem:[#allocation4 + $0x60] sm:$0xff]
      %v414 = vld [vmem:[#allocation4 + $0x68] sm:$0xff]
      %v415 = vld [vmem:[#allocation4 + $0x70] sm:$0xff]
      %v416 = vld [vmem:[#allocation4 + $0x78] sm:$0xff]
      %v417 = vsel %vm355, %v401, 0.0
      %v418 = vsel %vm355, %v402, 0.0
      %v419 = vadd.f32 %v417, %v418
      %v420 = vsel %vm355, %v403, 0.0
      %v421 = vadd.f32 %v419, %v420
      %v422 = vsel %vm355, %v404, 0.0
      %v423 = vadd.f32 %v421, %v422
      %v424 = vsel %vm355, %v405, 0.0
      %v425 = vadd.f32 %v423, %v424
      %v426 = vsel %vm355, %v406, 0.0
      %v427 = vadd.f32 %v425, %v426
      %v428 = vsel %vm355, %v407, 0.0
      %v429 = vadd.f32 %v427, %v428
      %v430 = vsel %vm355, %v408, 0.0
      %v431 = vadd.f32 %v429, %v430
      %v432 = vsel %vm355, %v409, 0.0
      %v433 = vadd.f32 %v431, %v432
      %v434 = vsel %vm355, %v410, 0.0
      %v435 = vadd.f32 %v433, %v434
      %v436 = vsel %vm355, %v411, 0.0
      %v437 = vadd.f32 %v435, %v436
      %v438 = vsel %vm355, %v412, 0.0
      %v439 = vadd.f32 %v437, %v438
      %v440 = vsel %vm355, %v413, 0.0
      %v441 = vadd.f32 %v439, %v440
      %v442 = vsel %vm355, %v414, 0.0
      %v443 = vadd.f32 %v441, %v442
      %v444 = vsel %vm355, %v415, 0.0
      %v445 = vadd.f32 %v443, %v444
      %v446 = vsel %vm355, %v416, 0.0
      %v447 = vadd.f32 %v445, %v446
      %v448 = vrot.slane %v447, 4
      %v449 = vadd.f32 %v447, %v448
      %v450 = vrot.slane %v449, 2
      %v451 = vadd.f32 %v449, %v450
      %v452 = vrot.slane %v451, 1
      %v453 = vadd.f32 %v451, %v452
      %v454 = vmul.f32 %v453, 0.0078125
      %v455 = vmul.f32 %v400, 0.01
      %v456 = vadd.f32 %v387, %v455
      %v457 = vmul.f32 %v454, 0.05
      %v458 = vadd.f32 %v456, %v457
      %v459 = vmul.f32 %v458, 0.00048828125
      %vm460 = vcmask 0
      %461 = vst.msk [vmem:[#allocation5] sm:$0x1] %vm460, %v459
    $region29: #{tpu_custom_call.1} parent=1 // pred_fallthru
      _
    // Predicated region
    $region30: #{tpu_custom_call.1} parent=1 // pred_check
      _
    $region31: #{tpu_custom_call.1} parent=1 // pred_check_branch
      %463 = sbr.rel (0) target = $region33
    $region32: #{tpu_custom_call.1} parent=1 // pred_region
      %s465 = ssub.s32 16, 16
      %466 = vsyncadd [#allocation6], %s465
      %s468 = sshll.u32 [#allocation5], 4
      %s469 = int_to_ptr.vmem [resolvable:$true] %s468
      %471 = dma.vmem_to_hbm [thread:$0]  %s469, 16, %s5, [#allocation6]
    $region33: #{tpu_custom_call.1} parent=1 // pred_fallthru
      _
    // Predicated region
    $region34: #{tpu_custom_call.1} parent=1 // pred_check
      _
    $region35: #{tpu_custom_call.1} parent=1 // pred_check_branch
      %473 = sbr.rel (0) target = $region37
    $region36: #{tpu_custom_call.1} parent=1 // pred_region
      %474 = dma.done [#allocation6], 16
    $region37: #{tpu_custom_call.1} parent=1 // pred_fallthru
      _
    %475 = vsyncpa [#allocation6], 1

</llo_original>
